<compile_context>
chip_gen: v7x
topology: tpu7x:2x2x1
jax: 0.10.0
libtpu: 0.0.40
codegen_flags: <defaults>
</compile_context>

<pallas_src>
import jax
import jax.numpy as jnp
from jax.experimental import pallas as pl
from jax.experimental.pallas import tpu as pltpu


# ---------------------------------------------------------------------------
# kernels (pure f32; layout/packing is handled entirely in the wrapper)
# ---------------------------------------------------------------------------

def _mlp2_kernel(x_ref, w1_ref, b1_ref, w2_ref, b2_ref, o_ref):
    """relu(x @ w1 + b1) @ w2 + b2 for one (tn, Cin_k) row tile."""
    h = jnp.dot(x_ref[...], w1_ref[...], preferred_element_type=jnp.float32)
    h = jnp.maximum(h + b1_ref[...], 0.0)
    o = jnp.dot(h, w2_ref[...], preferred_element_type=jnp.float32)
    o_ref[...] = (o + b2_ref[...]).astype(o_ref.dtype)


def _linear_kernel(x_ref, w_ref, b_ref, o_ref):
    """x @ w + b for one (tn, Cin_k) row tile (extra_layer=False path)."""
    o = jnp.dot(x_ref[...], w_ref[...], preferred_element_type=jnp.float32)
    o_ref[...] = (o + b_ref[...]).astype(o_ref.dtype)


# ---------------------------------------------------------------------------
# wrapper helpers
# ---------------------------------------------------------------------------

def _block_diag(w, p):
    """(cin, cout) -> (p*cin, p*cout) block-diagonal replication of w."""
    cin, cout = w.shape
    eye = jnp.eye(p, dtype=w.dtype)
    bd = jnp.einsum("ij,kl->ikjl", eye, w)          # (p, cin, p, cout)
    return bd.reshape(p * cin, p * cout)


def _choose_pack(n_rows, feat_dims):
    """Pick a row-packing factor p so every feature dim becomes >=128 lanes."""
    smallest = min(feat_dims)
    if smallest >= 128:
        return 1
    p = -(-128 // smallest)                          # ceil(128 / smallest)
    # keep the block-diagonal weights small (they live in VMEM)
    p = min(p, max(1, 2048 // max(feat_dims)))
    if p <= 1 or n_rows % p != 0:
        return 1                                     # fallback: narrow layout
    return int(p)


# ---------------------------------------------------------------------------
# wrapper
# ---------------------------------------------------------------------------

def mlp_edge_decoder(x, w1, b1, w2=None, b2=None, *,
                     tile_n=32768, out_dtype=None,
                     vmem_limit_bytes=48 * 1024 * 1024):
    """Pallas TPU forward of MLP_Edge_Decoder.

    extra_layer=True  path: pass (x, w1, b1, w2, b2) -> relu(x@w1+b1)@w2+b2
    extra_layer=False path: pass (x, w1, b1)         -> x@w1+b1
    Weights are (in_features, out_features) (i.e. PyTorch layer.weight.T).
    Computation is f32 end-to-end (kernel is HBM-bound; MXU precision free).
    Leading dims of x are flattened, matching nn.Linear's broadcasting.
    """
    extra_layer = w2 is not None
    out_dtype = x.dtype if out_dtype is None else out_dtype

    Cin = x.shape[-1]
    lead_shape = x.shape[:-1]
    x2d = x.reshape(-1, Cin)
    N = x2d.shape[0]

    w1 = w1.astype(jnp.float32)
    b1 = b1.astype(jnp.float32)
    if extra_layer:
        w2 = w2.astype(jnp.float32)
        b2 = b2.astype(jnp.float32)
        H = w1.shape[1]
        Cout = w2.shape[1]
        feat_dims = (Cin, H, Cout)
    else:
        Cout = w1.shape[1]
        feat_dims = (Cin, Cout)

    # ---- lane-dense packing (row groups -> feature axis, block-diag weights)
    p = _choose_pack(N, feat_dims)
    if p > 1:
        xk = x2d.reshape(N // p, p * Cin)            # free, contiguous reshape
        w1k = _block_diag(w1, p)
        b1k = jnp.tile(b1, p).reshape(1, -1)
        if extra_layer:
            w2k = _block_diag(w2, p)
            b2k = jnp.tile(b2, p).reshape(1, -1)
    else:
        xk = x2d
        w1k = w1
        b1k = b1.reshape(1, -1)
        if extra_layer:
            w2k = w2
            b2k = b2.reshape(1, -1)

    rows, cin_k = xk.shape
    cout_k = w2k.shape[1] if extra_layer else w1k.shape[1]

    # ---- row tiling (in packed rows). Big tiles amortize the ~0.35us/step
    # overhead; partial last block is handled by Pallas padding/masking.
    tn_target = max(8, tile_n // p)
    if rows <= tn_target:
        tn = rows                                    # full dim: always legal
    else:
        tn = max(8, (tn_target // 8) * 8)            # 8-aligned row tile
    grid = (pl.cdiv(rows, tn),)

    compiler_params = pltpu.CompilerParams(
        dimension_semantics=("parallel",),           # rows independent
        vmem_limit_bytes=vmem_limit_bytes,
    )

    if extra_layer:
        hid_k = w1k.shape[1]
        flops = 2 * rows * (cin_k * hid_k + hid_k * cout_k)
        bytes_accessed = (xk.size * 4 + w1k.size * 4 + w2k.size * 4
                          + b1k.size * 4 + b2k.size * 4
                          + rows * cout_k * jnp.dtype(out_dtype).itemsize)
        out2d = pl.pallas_call(
            _mlp2_kernel,
            out_shape=jax.ShapeDtypeStruct((rows, cout_k), out_dtype),
            grid_spec=pltpu.PrefetchScalarGridSpec(
                num_scalar_prefetch=0,
                grid=grid,
                in_specs=[
                    pl.BlockSpec((tn, cin_k), lambda i: (i, 0)),      # streamed
                    pl.BlockSpec((cin_k, hid_k), lambda i: (0, 0)),   # resident
                    pl.BlockSpec((1, hid_k), lambda i: (0, 0)),       # resident
                    pl.BlockSpec((hid_k, cout_k), lambda i: (0, 0)),  # resident
                    pl.BlockSpec((1, cout_k), lambda i: (0, 0)),      # resident
                ],
                out_specs=pl.BlockSpec((tn, cout_k), lambda i: (i, 0)),
            ),
            compiler_params=compiler_params,
            cost_estimate=pl.CostEstimate(
                flops=flops, transcendentals=0, bytes_accessed=bytes_accessed),
        )(xk, w1k, b1k, w2k, b2k)
    else:
        flops = 2 * rows * cin_k * cout_k
        bytes_accessed = (xk.size * 4 + w1k.size * 4 + b1k.size * 4
                          + rows * cout_k * jnp.dtype(out_dtype).itemsize)
        out2d = pl.pallas_call(
            _linear_kernel,
            out_shape=jax.ShapeDtypeStruct((rows, cout_k), out_dtype),
            grid_spec=pltpu.PrefetchScalarGridSpec(
                num_scalar_prefetch=0,
                grid=grid,
                in_specs=[
                    pl.BlockSpec((tn, cin_k), lambda i: (i, 0)),
                    pl.BlockSpec((cin_k, cout_k), lambda i: (0, 0)),
                    pl.BlockSpec((1, cout_k), lambda i: (0, 0)),
                ],
                out_specs=pl.BlockSpec((tn, cout_k), lambda i: (i, 0)),
            ),
            compiler_params=compiler_params,
            cost_estimate=pl.CostEstimate(
                flops=flops, transcendentals=0, bytes_accessed=bytes_accessed),
        )(xk, w1k, b1k)

    # undo the row packing (free reshape) and restore leading dims
    out = out2d.reshape(N, Cout).reshape(lead_shape + (Cout,))
    return out


def init_params(key, in_channels, hidden_channels, out_channels):
    """Deterministic init mimicking nn.Linear's U(-1/sqrt(fan_in), ...)."""
    k1, k2, k3, k4 = jax.random.split(key, 4)
    lim1 = 1.0 / jnp.sqrt(in_channels)
    lim2 = 1.0 / jnp.sqrt(hidden_channels)
    # stored as (in_features, out_features) == W.T of the PyTorch layer
    w1 = jax.random.uniform(k1, (in_channels, hidden_channels),
                            jnp.float32, -lim1, lim1)
    b1 = jax.random.uniform(k2, (hidden_channels,), jnp.float32, -lim1, lim1)
    w2 = jax.random.uniform(k3, (hidden_channels, out_channels),
                            jnp.float32, -lim2, lim2)
    b2 = jax.random.uniform(k4, (out_channels,), jnp.float32, -lim2, lim2)
    return w1, b1, w2, b2


if __name__ == "__main__":
    # Small shapes consistent with the module (edge-feature MLP).
    N = 256                # number of edges / rows (divisible by pack=16)
    in_channels = 16
    hidden_channels = 32
    out_channels = 8

    key = jax.random.PRNGKey(0)
    kx, kp, kws, kbs = jax.random.split(key, 4)
    x = jax.random.normal(kx, (N, in_channels), jnp.float32)
    w1, b1, w2, b2 = init_params(kp, in_channels, hidden_channels, out_channels)

    # --- extra_layer=True, packed lane-dense path ---
    out = jax.block_until_ready(mlp_edge_decoder(x, w1, b1, w2, b2))
    assert out.shape == (N, out_channels)
    ref = jnp.maximum(x @ w1 + b1, 0.0) @ w2 + b2
    assert jnp.allclose(out, ref, atol=2e-2, rtol=2e-2), \
        "packed 2-layer mismatch vs f32 reference"

    # --- extra_layer=True, N not divisible by pack factor (fallback path) ---
    x_odd = x[:10]
    out_odd = jax.block_until_ready(mlp_edge_decoder(x_odd, w1, b1, w2, b2))
    ref_odd = jnp.maximum(x_odd @ w1 + b1, 0.0) @ w2 + b2
    assert out_odd.shape == (10, out_channels)
    assert jnp.allclose(out_odd, ref_odd, atol=2e-2, rtol=2e-2), \
        "fallback 2-layer mismatch vs f32 reference"

    # --- extra_layer=False path (single Linear) ---
    lim = 1.0 / jnp.sqrt(in_channels)
    ws = jax.random.uniform(kws, (in_channels, out_channels), jnp.float32, -lim, lim)
    bs = jax.random.uniform(kbs, (out_channels,), jnp.float32, -lim, lim)
    out_s = jax.block_until_ready(mlp_edge_decoder(x, ws, bs))
    ref_s = x @ ws + bs
    assert out_s.shape == (N, out_channels)
    assert jnp.allclose(out_s, ref_s, atol=2e-2, rtol=2e-2), \
        "single-layer mismatch vs f32 reference"

    print("KERNEL_OK")
</pallas_src>

<mosaic_0001>
module attributes {stable_mosaic.version = 11 : i64} {
  func.func @_mlp2_kernel(%arg0: i32, %arg1: memref<16x256xf32, #tpu.memory_space<vmem>>, %arg2: memref<256x512xf32, #tpu.memory_space<vmem>>, %arg3: memref<1x512xf32, #tpu.memory_space<vmem>>, %arg4: memref<512x128xf32, #tpu.memory_space<vmem>>, %arg5: memref<1x128xf32, #tpu.memory_space<vmem>>, %arg6: memref<16x128xf32, #tpu.memory_space<vmem>>) attributes {dimension_semantics = [#tpu.dimension_semantics<parallel>], iteration_bounds = array<i64: 1>, scalar_prefetch = 0 : i64, scratch_operands = 0 : i64, tpu.core_type = #tpu.core_type<tc>, window_params = [{transform_indices = @transform_0, window_bounds = array<i64: 16, 256>}, {pipeline_mode = #tpu.pipeline_mode<synchronous>, transform_indices = @transform_1, window_bounds = array<i64: 256, 512>}, {pipeline_mode = #tpu.pipeline_mode<synchronous>, transform_indices = @transform_2, window_bounds = array<i64: 1, 512>}, {pipeline_mode = #tpu.pipeline_mode<synchronous>, transform_indices = @transform_3, window_bounds = array<i64: 512, 128>}, {pipeline_mode = #tpu.pipeline_mode<synchronous>, transform_indices = @transform_4, window_bounds = array<i64: 1, 128>}, {transform_indices = @transform_5, window_bounds = array<i64: 16, 128>}]} {
    %c0 = arith.constant 0 : index
    %c0_0 = arith.constant 0 : index
    %0 = vector.load %arg1[%c0, %c0_0] : memref<16x256xf32, #tpu.memory_space<vmem>>, vector<16x256xf32>
    %c0_1 = arith.constant 0 : index
    %c0_2 = arith.constant 0 : index
    %1 = vector.load %arg2[%c0_1, %c0_2] : memref<256x512xf32, #tpu.memory_space<vmem>>, vector<256x512xf32>
    %cst = arith.constant dense<0.000000e+00> : vector<16x512xf32>
    %2 = tpu.matmul %0, %1, %cst {dimension_numbers = #tpu.dot_dimension_numbers<[1], [0], [0], [1], [0, 0, 1, 1], [], []>} : vector<16x256xf32>, vector<256x512xf32>, vector<16x512xf32> -> vector<16x512xf32>
    %c0_3 = arith.constant 0 : index
    %c0_4 = arith.constant 0 : index
    %3 = vector.load %arg3[%c0_3, %c0_4] : memref<1x512xf32, #tpu.memory_space<vmem>>, vector<1x512xf32>
    %4 = vector.broadcast %3 : vector<1x512xf32> to vector<16x512xf32>
    %5 = arith.addf %2, %4 : vector<16x512xf32>
    %cst_5 = arith.constant 0.000000e+00 : f32
    %6 = vector.broadcast %cst_5 : f32 to vector<16x512xf32>
    %7 = arith.maximumf %5, %6 : vector<16x512xf32>
    %c0_6 = arith.constant 0 : index
    %c0_7 = arith.constant 0 : index
    %8 = vector.load %arg4[%c0_6, %c0_7] : memref<512x128xf32, #tpu.memory_space<vmem>>, vector<512x128xf32>
    %cst_8 = arith.constant dense<0.000000e+00> : vector<16x128xf32>
    %9 = tpu.matmul %7, %8, %cst_8 {dimension_numbers = #tpu.dot_dimension_numbers<[1], [0], [0], [1], [0, 0, 1, 1], [], []>} : vector<16x512xf32>, vector<512x128xf32>, vector<16x128xf32> -> vector<16x128xf32>
    %c0_9 = arith.constant 0 : index
    %c0_10 = arith.constant 0 : index
    %10 = vector.load %arg5[%c0_9, %c0_10] : memref<1x128xf32, #tpu.memory_space<vmem>>, vector<1x128xf32>
    %11 = vector.broadcast %10 : vector<1x128xf32> to vector<16x128xf32>
    %12 = arith.addf %9, %11 : vector<16x128xf32>
    %c0_11 = arith.constant 0 : index
    %c0_12 = arith.constant 0 : index
    %13 = vector.load %arg6[%c0_11, %c0_12] : memref<16x128xf32, #tpu.memory_space<vmem>>, vector<16x128xf32>
    tpu.vector_store %arg6[%c0_11, %c0_12], %12 {strides = array<i32>} : memref<16x128xf32, #tpu.memory_space<vmem>>, vector<16x128xf32>,
    return
  }
  func.func @transform_0(%arg0: i32) -> (i32, i32) {
    %c0_i32 = arith.constant 0 : i32
    %c0_i32_0 = arith.constant 0 : i32
    return %arg0, %c0_i32 : i32, i32
  }
  func.func @transform_1(%arg0: i32) -> (i32, i32) {
    %c0_i32 = arith.constant 0 : i32
    %c0_i32_0 = arith.constant 0 : i32
    %c0_i32_1 = arith.constant 0 : i32
    return %c0_i32, %c0_i32_0 : i32, i32
  }
  func.func @transform_2(%arg0: i32) -> (i32, i32) {
    %c0_i32 = arith.constant 0 : i32
    %c0_i32_0 = arith.constant 0 : i32
    %c0_i32_1 = arith.constant 0 : i32
    return %c0_i32, %c0_i32_0 : i32, i32
  }
  func.func @transform_3(%arg0: i32) -> (i32, i32) {
    %c0_i32 = arith.constant 0 : i32
    %c0_i32_0 = arith.constant 0 : i32
    %c0_i32_1 = arith.constant 0 : i32
    return %c0_i32, %c0_i32_0 : i32, i32
  }
  func.func @transform_4(%arg0: i32) -> (i32, i32) {
    %c0_i32 = arith.constant 0 : i32
    %c0_i32_0 = arith.constant 0 : i32
    %c0_i32_1 = arith.constant 0 : i32
    return %c0_i32, %c0_i32_0 : i32, i32
  }
  func.func @transform_5(%arg0: i32) -> (i32, i32) {
    %c0_i32 = arith.constant 0 : i32
    %c0_i32_0 = arith.constant 0 : i32
    return %arg0, %c0_i32 : i32, i32
  }
}

</mosaic_0001>

<llo_original>
// kernel: tpu_custom_call.1
$region0: #{tpu_custom_call.1}
  #allocation0 [shape = 'u32[]', space=smem, size = 0x4, offset = 0x4, fixed_abs, tag = 'smem constant byte address 0x4 - core index']
  #allocation1 [shape = 'u32[144,128]{1,0:T(1,128)}', space=vmem, size = 0x12000, scoped, tag = 'internal scratch']
  %s0 = inlined_call_operand.hbm [shape: f32[16,256], index: 0, kind: input, shape index: {}]
  %s1 = inlined_call_operand.hbm [shape: f32[256,512], index: 1, kind: input, shape index: {}]
  %s2 = inlined_call_operand.vmem [shape: f32[1,512], index: 2, kind: input, shape index: {}]
  %s3 = inlined_call_operand.hbm [shape: f32[512,128], index: 3, kind: input, shape index: {}]
  %s4 = inlined_call_operand.vmem [shape: f32[1,128], index: 4, kind: input, shape index: {}]
  %s5 = inlined_call_operand.hbm [shape: f32[16,128], index: 5, kind: output, shape index: {}]
  %s6 = sld [smem:[#allocation0]]
  $region42: #{tpu_custom_call.1} parent=0
    _
  %s8 = ssub.s32 1, %s6
  %s9 = scalar_select 0, %s8, %s6
  $region1: #{tpu_custom_call.1} parent=0
    #allocation2 [shape = 'u8[16384]{0}', space=vmem, size = 0x4000, scoped, tag = 'input window, operand 0, single buffered']
    #allocation3 [shape = 's32[1]{0}', space=sflag, size = 0x4, scoped, tag = 'scoped memory for tpu_custom_call.1']
    #allocation4 [shape = 's32[1]{0}', space=sflag, size = 0x4, scoped, tag = 'scoped memory for tpu_custom_call.1']
    #allocation5 [shape = 'u8[524288]{0}', space=vmem, size = 0x80000, scoped, tag = 'input window, operand 1, single buffered']
    #allocation6 [shape = 's32[1]{0}', space=sflag, size = 0x4, scoped, tag = 'scoped memory for tpu_custom_call.1']
    #allocation7 [shape = 'u8[262144]{0}', space=vmem, size = 0x40000, scoped, tag = 'input window, operand 3, single buffered']
    #allocation8 [shape = 'u8[8192]{0}', space=vmem, size = 0x2000, scoped, tag = 'output window, operand 0, single buffered']
    %10 = vsyncpa [#allocation3], 0
    %11 = vsyncpa [#allocation6], 0
    %12 = vsyncpa [#allocation4], 0
    // Predicated region
    $region2: #{tpu_custom_call.1} parent=1 // pred_check
      _
    $region3: #{tpu_custom_call.1} parent=1 // pred_check_branch
      %14 = sbr.rel (0) target = $region5
    $region4: #{tpu_custom_call.1} parent=1 // pred_region
      %s16 = ssub.s32 512, 512
      %17 = vsyncadd [#allocation3], %s16
      %s18 = sshll.u32 [#allocation2], 4
      %s19 = int_to_ptr.vmem [resolvable:$true] %s18
      %24 = dma.hbm_to_vmem [thread:$0]  %s0, 512, %s19, [#allocation3], 256, 256, 16
    $region5: #{tpu_custom_call.1} parent=1 // pred_fallthru
      _
    // Predicated region
    $region6: #{tpu_custom_call.1} parent=1 // pred_check
      _
    $region7: #{tpu_custom_call.1} parent=1 // pred_check_branch
      %26 = sbr.rel (0) target = $region9
    $region8: #{tpu_custom_call.1} parent=1 // pred_region
      %s28 = ssub.s32 16384, 16384
      %29 = vsyncadd [#allocation6], %s28
      %s30 = sshll.u32 [#allocation5], 4
      %s31 = int_to_ptr.vmem [resolvable:$true] %s30
      %36 = dma.hbm_to_vmem [thread:$0]  %s1, 16384, %s31, [#allocation6], 512, 512, 32
    $region9: #{tpu_custom_call.1} parent=1 // pred_fallthru
      _
    // Predicated region
    $region10: #{tpu_custom_call.1} parent=1 // pred_check
      _
    $region11: #{tpu_custom_call.1} parent=1 // pred_check_branch
      %38 = sbr.rel (0) target = $region13
    $region12: #{tpu_custom_call.1} parent=1 // pred_region
      _
    $region13: #{tpu_custom_call.1} parent=1 // pred_fallthru
      _
    // Predicated region
    $region14: #{tpu_custom_call.1} parent=1 // pred_check
      _
    $region15: #{tpu_custom_call.1} parent=1 // pred_check_branch
      %40 = sbr.rel (0) target = $region17
    $region16: #{tpu_custom_call.1} parent=1 // pred_region
      %s42 = ssub.s32 8192, 8192
      %43 = vsyncadd [#allocation6], %s42
      %s44 = sshll.u32 [#allocation7], 4
      %s45 = int_to_ptr.vmem [resolvable:$true] %s44
      %50 = dma.hbm_to_vmem [thread:$0]  %s3, 8192, %s45, [#allocation6], 128, 128, 8
    $region17: #{tpu_custom_call.1} parent=1 // pred_fallthru
      _
    // Predicated region
    $region18: #{tpu_custom_call.1} parent=1 // pred_check
      _
    $region19: #{tpu_custom_call.1} parent=1 // pred_check_branch
      %52 = sbr.rel (0) target = $region21
    $region20: #{tpu_custom_call.1} parent=1 // pred_region
      _
    $region21: #{tpu_custom_call.1} parent=1 // pred_fallthru
      _
    // Predicated region
    $region22: #{tpu_custom_call.1} parent=1 // pred_check
      _
    $region23: #{tpu_custom_call.1} parent=1 // pred_check_branch
      %54 = sbr.rel (0) target = $region25
    $region24: #{tpu_custom_call.1} parent=1 // pred_region
      %55 = dma.done [#allocation3], 512
    $region25: #{tpu_custom_call.1} parent=1 // pred_fallthru
      _
    // Predicated region
    $region26: #{tpu_custom_call.1} parent=1 // pred_check
      _
    $region27: #{tpu_custom_call.1} parent=1 // pred_check_branch
      %57 = sbr.rel (0) target = $region29
    $region28: #{tpu_custom_call.1} parent=1 // pred_region
      %58 = dma.done [#allocation6], 16384
    $region29: #{tpu_custom_call.1} parent=1 // pred_fallthru
      _
    // Predicated region
    $region30: #{tpu_custom_call.1} parent=1 // pred_check
      _
    $region31: #{tpu_custom_call.1} parent=1 // pred_check_branch
      %60 = sbr.rel (0) target = $region33
    $region32: #{tpu_custom_call.1} parent=1 // pred_region
      %61 = dma.done [#allocation6], 8192
    $region33: #{tpu_custom_call.1} parent=1 // pred_fallthru
      _
    %v62 = vld [vmem:[#allocation2] sm:$0xff]
    %v63 = vld [vmem:[#allocation2 + $0x8] sm:$0xff]
    %v64 = vld [vmem:[#allocation2 + $0x10] sm:$0xff]
    %v65 = vld [vmem:[#allocation2 + $0x18] sm:$0xff]
    %v66 = vld [vmem:[#allocation5] sm:$0xff]
    %v67 = vld [vmem:[#allocation5 + $0x8] sm:$0xff]
    %v68 = vld [vmem:[#allocation5 + $0x10] sm:$0xff]
    %v69 = vld [vmem:[#allocation5 + $0x18] sm:$0xff]
    %v70 = vld [vmem:[#allocation5 + $0x20] sm:$0xff]
    %v71 = vld [vmem:[#allocation5 + $0x28] sm:$0xff]
    %v72 = vld [vmem:[#allocation5 + $0x30] sm:$0xff]
    %v73 = vld [vmem:[#allocation5 + $0x38] sm:$0xff]
    %v74 = vld [vmem:[#allocation5 + $0x40] sm:$0xff]
    %v75 = vld [vmem:[#allocation5 + $0x48] sm:$0xff]
    %v76 = vld [vmem:[#allocation5 + $0x50] sm:$0xff]
    %v77 = vld [vmem:[#allocation5 + $0x58] sm:$0xff]
    %v78 = vld [vmem:[#allocation5 + $0x60] sm:$0xff]
    %v79 = vld [vmem:[#allocation5 + $0x68] sm:$0xff]
    %v80 = vld [vmem:[#allocation5 + $0x70] sm:$0xff]
    %v81 = vld [vmem:[#allocation5 + $0x78] sm:$0xff]
    %v82 = vld [vmem:[#allocation5 + $0x80] sm:$0xff]
    %v83 = vld [vmem:[#allocation5 + $0x88] sm:$0xff]
    %v84 = vld [vmem:[#allocation5 + $0x90] sm:$0xff]
    %v85 = vld [vmem:[#allocation5 + $0x98] sm:$0xff]
    %v86 = vld [vmem:[#allocation5 + $0xa0] sm:$0xff]
    %v87 = vld [vmem:[#allocation5 + $0xa8] sm:$0xff]
    %v88 = vld [vmem:[#allocation5 + $0xb0] sm:$0xff]
    %v89 = vld [vmem:[#allocation5 + $0xb8] sm:$0xff]
    %v90 = vld [vmem:[#allocation5 + $0xc0] sm:$0xff]
    %v91 = vld [vmem:[#allocation5 + $0xc8] sm:$0xff]
    %v92 = vld [vmem:[#allocation5 + $0xd0] sm:$0xff]
    %v93 = vld [vmem:[#allocation5 + $0xd8] sm:$0xff]
    %v94 = vld [vmem:[#allocation5 + $0xe0] sm:$0xff]
    %v95 = vld [vmem:[#allocation5 + $0xe8] sm:$0xff]
    %v96 = vld [vmem:[#allocation5 + $0xf0] sm:$0xff]
    %v97 = vld [vmem:[#allocation5 + $0xf8] sm:$0xff]
    %v98 = vld [vmem:[#allocation5 + $0x100] sm:$0xff]
    %v99 = vld [vmem:[#allocation5 + $0x108] sm:$0xff]
    %v100 = vld [vmem:[#allocation5 + $0x110] sm:$0xff]
    %v101 = vld [vmem:[#allocation5 + $0x118] sm:$0xff]
    %v102 = vld [vmem:[#allocation5 + $0x120] sm:$0xff]
    %v103 = vld [vmem:[#allocation5 + $0x128] sm:$0xff]
    %v104 = vld [vmem:[#allocation5 + $0x130] sm:$0xff]
    %v105 = vld [vmem:[#allocation5 + $0x138] sm:$0xff]
    %v106 = vld [vmem:[#allocation5 + $0x140] sm:$0xff]
    %v107 = vld [vmem:[#allocation5 + $0x148] sm:$0xff]
    %v108 = vld [vmem:[#allocation5 + $0x150] sm:$0xff]
    %v109 = vld [vmem:[#allocation5 + $0x158] sm:$0xff]
    %v110 = vld [vmem:[#allocation5 + $0x160] sm:$0xff]
    %v111 = vld [vmem:[#allocation5 + $0x168] sm:$0xff]
    %v112 = vld [vmem:[#allocation5 + $0x170] sm:$0xff]
    %v113 = vld [vmem:[#allocation5 + $0x178] sm:$0xff]
    %v114 = vld [vmem:[#allocation5 + $0x180] sm:$0xff]
    %v115 = vld [vmem:[#allocation5 + $0x188] sm:$0xff]
    %v116 = vld [vmem:[#allocation5 + $0x190] sm:$0xff]
    %v117 = vld [vmem:[#allocation5 + $0x198] sm:$0xff]
    %v118 = vld [vmem:[#allocation5 + $0x1a0] sm:$0xff]
    %v119 = vld [vmem:[#allocation5 + $0x1a8] sm:$0xff]
    %v120 = vld [vmem:[#allocation5 + $0x1b0] sm:$0xff]
    %v121 = vld [vmem:[#allocation5 + $0x1b8] sm:$0xff]
    %v122 = vld [vmem:[#allocation5 + $0x1c0] sm:$0xff]
    %v123 = vld [vmem:[#allocation5 + $0x1c8] sm:$0xff]
    %v124 = vld [vmem:[#allocation5 + $0x1d0] sm:$0xff]
    %v125 = vld [vmem:[#allocation5 + $0x1d8] sm:$0xff]
    %v126 = vld [vmem:[#allocation5 + $0x1e0] sm:$0xff]
    %v127 = vld [vmem:[#allocation5 + $0x1e8] sm:$0xff]
    %v128 = vld [vmem:[#allocation5 + $0x1f0] sm:$0xff]
    %v129 = vld [vmem:[#allocation5 + $0x1f8] sm:$0xff]
    %v130 = vld [vmem:[#allocation5 + $0x200] sm:$0xff]
    %v131 = vld [vmem:[#allocation5 + $0x208] sm:$0xff]
    %v132 = vld [vmem:[#allocation5 + $0x210] sm:$0xff]
    %v133 = vld [vmem:[#allocation5 + $0x218] sm:$0xff]
    %v134 = vld [vmem:[#allocation5 + $0x220] sm:$0xff]
    %v135 = vld [vmem:[#allocation5 + $0x228] sm:$0xff]
    %v136 = vld [vmem:[#allocation5 + $0x230] sm:$0xff]
    %v137 = vld [vmem:[#allocation5 + $0x238] sm:$0xff]
    %v138 = vld [vmem:[#allocation5 + $0x240] sm:$0xff]
    %v139 = vld [vmem:[#allocation5 + $0x248] sm:$0xff]
    %v140 = vld [vmem:[#allocation5 + $0x250] sm:$0xff]
    %v141 = vld [vmem:[#allocation5 + $0x258] sm:$0xff]
    %v142 = vld [vmem:[#allocation5 + $0x260] sm:$0xff]
    %v143 = vld [vmem:[#allocation5 + $0x268] sm:$0xff]
    %v144 = vld [vmem:[#allocation5 + $0x270] sm:$0xff]
    %v145 = vld [vmem:[#allocation5 + $0x278] sm:$0xff]
    %v146 = vld [vmem:[#allocation5 + $0x280] sm:$0xff]
    %v147 = vld [vmem:[#allocation5 + $0x288] sm:$0xff]
    %v148 = vld [vmem:[#allocation5 + $0x290] sm:$0xff]
    %v149 = vld [vmem:[#allocation5 + $0x298] sm:$0xff]
    %v150 = vld [vmem:[#allocation5 + $0x2a0] sm:$0xff]
    %v151 = vld [vmem:[#allocation5 + $0x2a8] sm:$0xff]
    %v152 = vld [vmem:[#allocation5 + $0x2b0] sm:$0xff]
    %v153 = vld [vmem:[#allocation5 + $0x2b8] sm:$0xff]
    %v154 = vld [vmem:[#allocation5 + $0x2c0] sm:$0xff]
    %v155 = vld [vmem:[#allocation5 + $0x2c8] sm:$0xff]
    %v156 = vld [vmem:[#allocation5 + $0x2d0] sm:$0xff]
    %v157 = vld [vmem:[#allocation5 + $0x2d8] sm:$0xff]
    %v158 = vld [vmem:[#allocation5 + $0x2e0] sm:$0xff]
    %v159 = vld [vmem:[#allocation5 + $0x2e8] sm:$0xff]
    %v160 = vld [vmem:[#allocation5 + $0x2f0] sm:$0xff]
    %v161 = vld [vmem:[#allocation5 + $0x2f8] sm:$0xff]
    %v162 = vld [vmem:[#allocation5 + $0x300] sm:$0xff]
    %v163 = vld [vmem:[#allocation5 + $0x308] sm:$0xff]
    %v164 = vld [vmem:[#allocation5 + $0x310] sm:$0xff]
    %v165 = vld [vmem:[#allocation5 + $0x318] sm:$0xff]
    %v166 = vld [vmem:[#allocation5 + $0x320] sm:$0xff]
    %v167 = vld [vmem:[#allocation5 + $0x328] sm:$0xff]
    %v168 = vld [vmem:[#allocation5 + $0x330] sm:$0xff]
    %v169 = vld [vmem:[#allocation5 + $0x338] sm:$0xff]
    %v170 = vld [vmem:[#allocation5 + $0x340] sm:$0xff]
    %v171 = vld [vmem:[#allocation5 + $0x348] sm:$0xff]
    %v172 = vld [vmem:[#allocation5 + $0x350] sm:$0xff]
    %v173 = vld [vmem:[#allocation5 + $0x358] sm:$0xff]
    %v174 = vld [vmem:[#allocation5 + $0x360] sm:$0xff]
    %v175 = vld [vmem:[#allocation5 + $0x368] sm:$0xff]
    %v176 = vld [vmem:[#allocation5 + $0x370] sm:$0xff]
    %v177 = vld [vmem:[#allocation5 + $0x378] sm:$0xff]
    %v178 = vld [vmem:[#allocation5 + $0x380] sm:$0xff]
    %v179 = vld [vmem:[#allocation5 + $0x388] sm:$0xff]
    %v180 = vld [vmem:[#allocation5 + $0x390] sm:$0xff]
    %v181 = vld [vmem:[#allocation5 + $0x398] sm:$0xff]
    %v182 = vld [vmem:[#allocation5 + $0x3a0] sm:$0xff]
    %v183 = vld [vmem:[#allocation5 + $0x3a8] sm:$0xff]
    %v184 = vld [vmem:[#allocation5 + $0x3b0] sm:$0xff]
    %v185 = vld [vmem:[#allocation5 + $0x3b8] sm:$0xff]
    %v186 = vld [vmem:[#allocation5 + $0x3c0] sm:$0xff]
    %v187 = vld [vmem:[#allocation5 + $0x3c8] sm:$0xff]
    %v188 = vld [vmem:[#allocation5 + $0x3d0] sm:$0xff]
    %v189 = vld [vmem:[#allocation5 + $0x3d8] sm:$0xff]
    %v190 = vld [vmem:[#allocation5 + $0x3e0] sm:$0xff]
    %v191 = vld [vmem:[#allocation5 + $0x3e8] sm:$0xff]
    %v192 = vld [vmem:[#allocation5 + $0x3f0] sm:$0xff]
    %v193 = vld [vmem:[#allocation5 + $0x3f8] sm:$0xff]
    %v194 = vld [vmem:[%s2] sm:$0xf]
    %v196 = vlaneseq
    %v197 = vshrl.u32 %v196, 7
    %v198 = vsub.s32 0, %v197
    %v199 = vrot.slane %v194, %v198
    %v200 = vlaneseq
    %v201 = vshrl.u32 %v200, 7
    %v202 = vsub.s32 1, %v201
    %v203 = vrot.slane %v194, %v202
    %v204 = vlaneseq
    %v205 = vshrl.u32 %v204, 7
    %v206 = vsub.s32 2, %v205
    %v207 = vrot.slane %v194, %v206
    %v208 = vlaneseq
    %v209 = vshrl.u32 %v208, 7
    %v210 = vsub.s32 3, %v209
    %v211 = vrot.slane %v194, %v210
    %216 = vmatprep.subr.mxu0 %v67
    %217 = vmatpush1.msra.mxu0 %v66
    %218 = vmatprep.subr.mxu0 %v71
    %219 = vmatpush1.msra.mxu0 %v70
    %220 = vmatprep.subr.mxu0 %v75
    %221 = vmatpush1.msra.mxu0 %v74
    %222 = vmatprep.subr.mxu0 %v79
    %223 = vmatpush1.msra.mxu0 %v78
    %224 = vmatprep.subr.mxu0 %v83
    %225 = vmatpush1.msra.mxu0 %v82
    %226 = vmatprep.subr.mxu0 %v87
    %227 = vmatpush1.msra.mxu0 %v86
    %228 = vmatprep.subr.mxu0 %v91
    %229 = vmatpush1.msra.mxu0 %v90
    %230 = vmatprep.subr.mxu0 %v95
    %231 = vmatpush1.msra.mxu0 %v94
    %232 = vmatprep.subr.mxu0 %v99
    %233 = vmatpush1.msra.mxu0 %v98
    %234 = vmatprep.subr.mxu0 %v103
    %235 = vmatpush1.msra.mxu0 %v102
    %236 = vmatprep.subr.mxu0 %v107
    %237 = vmatpush1.msra.mxu0 %v106
    %238 = vmatprep.subr.mxu0 %v111
    %239 = vmatpush1.msra.mxu0 %v110
    %240 = vmatprep.subr.mxu0 %v115
    %241 = vmatpush1.msra.mxu0 %v114
    %242 = vmatprep.subr.mxu0 %v119
    %243 = vmatpush1.msra.mxu0 %v118
    %244 = vmatprep.subr.mxu0 %v123
    %245 = vmatpush1.msra.mxu0 %v122
    %246 = vmatprep.subr.mxu0 %v127
    %247 = vmatpush1.msra.mxu0 %v126
    %248 = vmatprep.subr.mxu0 %v131
    %249 = vmatpush1.msra.mxu0 %v130
    %250 = vmatprep.subr.mxu0 %v135
    %251 = vmatpush1.msra.mxu0 %v134
    %252 = vmatprep.subr.mxu0 %v139
    %253 = vmatpush1.msra.mxu0 %v138
    %254 = vmatprep.subr.mxu0 %v143
    %255 = vmatpush1.msra.mxu0 %v142
    %256 = vmatprep.subr.mxu0 %v147
    %257 = vmatpush1.msra.mxu0 %v146
    %258 = vmatprep.subr.mxu0 %v151
    %259 = vmatpush1.msra.mxu0 %v150
    %260 = vmatprep.subr.mxu0 %v155
    %261 = vmatpush1.msra.mxu0 %v154
    %262 = vmatprep.subr.mxu0 %v159
    %263 = vmatpush1.msra.mxu0 %v158
    %264 = vmatprep.subr.mxu0 %v163
    %265 = vmatpush1.msra.mxu0 %v162
    %266 = vmatprep.subr.mxu0 %v167
    %267 = vmatpush1.msra.mxu0 %v166
    %268 = vmatprep.subr.mxu0 %v171
    %269 = vmatpush1.msra.mxu0 %v170
    %270 = vmatprep.subr.mxu0 %v175
    %271 = vmatpush1.msra.mxu0 %v174
    %272 = vmatprep.subr.mxu0 %v179
    %273 = vmatpush1.msra.mxu0 %v178
    %274 = vmatprep.subr.mxu0 %v183
    %275 = vmatpush1.msra.mxu0 %v182
    %276 = vmatprep.subr.mxu0 %v187
    %277 = vmatpush1.msra.mxu0 %v186
    %278 = vmatprep.subr.mxu0 %v191
    %279 = vmatpush1.msra.mxu0 %v190
    %280 = vmatprep.mubr.f32.mxu0 %v63
    %281 = vmatmul.mubr.f32.gmra.mrb[0].mxu0 %v62
    %v282 = vpop.f32.mrb[0].mxu0
    %v283 = vadd.f32 %v199, %v282
    %v284 = vpop.f32.mrb[0].mxu0
    %v285 = vadd.f32 %v203, %v284
    %286 = vmatprep.mubr.f32.mxu0 %v65
    %287 = vmatmul.mubr.f32.gmra.mrb[0].mxu0 %v64
    %v288 = vpop.f32.mrb[0].mxu0
    %v289 = vadd.f32 %v199, %v288
    %v290 = vpop.f32.mrb[0].mxu0
    %v291 = vadd.f32 %v203, %v290
    %292 = vdwg.mxu0
    %293 = vmatprep.subr.mxu0 %v69
    %294 = vmatpush1.msra.mxu0 %v68
    %295 = vmatprep.subr.mxu0 %v73
    %296 = vmatpush1.msra.mxu0 %v72
    %297 = vmatprep.subr.mxu0 %v77
    %298 = vmatpush1.msra.mxu0 %v76
    %299 = vmatprep.subr.mxu0 %v81
    %300 = vmatpush1.msra.mxu0 %v80
    %301 = vmatprep.subr.mxu0 %v85
    %302 = vmatpush1.msra.mxu0 %v84
    %303 = vmatprep.subr.mxu0 %v89
    %304 = vmatpush1.msra.mxu0 %v88
    %305 = vmatprep.subr.mxu0 %v93
    %306 = vmatpush1.msra.mxu0 %v92
    %307 = vmatprep.subr.mxu0 %v97
    %308 = vmatpush1.msra.mxu0 %v96
    %309 = vmatprep.subr.mxu0 %v101
    %310 = vmatpush1.msra.mxu0 %v100
    %311 = vmatprep.subr.mxu0 %v105
    %312 = vmatpush1.msra.mxu0 %v104
    %313 = vmatprep.subr.mxu0 %v109
    %314 = vmatpush1.msra.mxu0 %v108
    %315 = vmatprep.subr.mxu0 %v113
    %316 = vmatpush1.msra.mxu0 %v112
    %317 = vmatprep.subr.mxu0 %v117
    %318 = vmatpush1.msra.mxu0 %v116
    %319 = vmatprep.subr.mxu0 %v121
    %320 = vmatpush1.msra.mxu0 %v120
    %321 = vmatprep.subr.mxu0 %v125
    %322 = vmatpush1.msra.mxu0 %v124
    %323 = vmatprep.subr.mxu0 %v129
    %324 = vmatpush1.msra.mxu0 %v128
    %325 = vmatprep.subr.mxu0 %v133
    %326 = vmatpush1.msra.mxu0 %v132
    %327 = vmatprep.subr.mxu0 %v137
    %328 = vmatpush1.msra.mxu0 %v136
    %329 = vmatprep.subr.mxu0 %v141
    %330 = vmatpush1.msra.mxu0 %v140
    %331 = vmatprep.subr.mxu0 %v145
    %332 = vmatpush1.msra.mxu0 %v144
    %333 = vmatprep.subr.mxu0 %v149
    %334 = vmatpush1.msra.mxu0 %v148
    %335 = vmatprep.subr.mxu0 %v153
    %336 = vmatpush1.msra.mxu0 %v152
    %337 = vmatprep.subr.mxu0 %v157
    %338 = vmatpush1.msra.mxu0 %v156
    %339 = vmatprep.subr.mxu0 %v161
    %340 = vmatpush1.msra.mxu0 %v160
    %341 = vmatprep.subr.mxu0 %v165
    %342 = vmatpush1.msra.mxu0 %v164
    %343 = vmatprep.subr.mxu0 %v169
    %344 = vmatpush1.msra.mxu0 %v168
    %345 = vmatprep.subr.mxu0 %v173
    %346 = vmatpush1.msra.mxu0 %v172
    %347 = vmatprep.subr.mxu0 %v177
    %348 = vmatpush1.msra.mxu0 %v176
    %349 = vmatprep.subr.mxu0 %v181
    %350 = vmatpush1.msra.mxu0 %v180
    %351 = vmatprep.subr.mxu0 %v185
    %352 = vmatpush1.msra.mxu0 %v184
    %353 = vmatprep.subr.mxu0 %v189
    %354 = vmatpush1.msra.mxu0 %v188
    %355 = vmatprep.subr.mxu0 %v193
    %356 = vmatpush1.msra.mxu0 %v192
    %357 = vmatprep.mubr.f32.mxu0 %v63
    %358 = vmatmul.mubr.f32.gmra.mrb[0].mxu0 %v62
    %v359 = vpop.f32.mrb[0].mxu0
    %v360 = vadd.f32 %v207, %v359
    %v361 = vpop.f32.mrb[0].mxu0
    %v362 = vadd.f32 %v211, %v361
    %363 = vmatprep.mubr.f32.mxu0 %v65
    %364 = vmatmul.mubr.f32.gmra.mrb[0].mxu0 %v64
    %v365 = vpop.f32.mrb[0].mxu0
    %v366 = vadd.f32 %v207, %v365
    %v367 = vpop.f32.mrb[0].mxu0
    %v368 = vadd.f32 %v211, %v367
    %369 = vdwg.mxu0
    %v370 = vmax.f32 %v283, 0.0
    %v371 = vmax.f32 %v285, 0.0
    %v372 = vmax.f32 %v360, 0.0
    %v373 = vmax.f32 %v362, 0.0
    %v374 = vmax.f32 %v289, 0.0
    %v375 = vmax.f32 %v291, 0.0
    %v376 = vmax.f32 %v366, 0.0
    %v377 = vmax.f32 %v368, 0.0
    %v378 = vld [vmem:[#allocation7] sm:$0xff]
    %v379 = vld [vmem:[#allocation7 + $0x8] sm:$0xff]
    %v380 = vld [vmem:[#allocation7 + $0x10] sm:$0xff]
    %v381 = vld [vmem:[#allocation7 + $0x18] sm:$0xff]
    %v382 = vld [vmem:[#allocation7 + $0x20] sm:$0xff]
    %v383 = vld [vmem:[#allocation7 + $0x28] sm:$0xff]
    %v384 = vld [vmem:[#allocation7 + $0x30] sm:$0xff]
    %v385 = vld [vmem:[#allocation7 + $0x38] sm:$0xff]
    %v386 = vld [vmem:[#allocation7 + $0x40] sm:$0xff]
    %v387 = vld [vmem:[#allocation7 + $0x48] sm:$0xff]
    %v388 = vld [vmem:[#allocation7 + $0x50] sm:$0xff]
    %v389 = vld [vmem:[#allocation7 + $0x58] sm:$0xff]
    %v390 = vld [vmem:[#allocation7 + $0x60] sm:$0xff]
    %v391 = vld [vmem:[#allocation7 + $0x68] sm:$0xff]
    %v392 = vld [vmem:[#allocation7 + $0x70] sm:$0xff]
    %v393 = vld [vmem:[#allocation7 + $0x78] sm:$0xff]
    %v394 = vld [vmem:[#allocation7 + $0x80] sm:$0xff]
    %v395 = vld [vmem:[#allocation7 + $0x88] sm:$0xff]
    %v396 = vld [vmem:[#allocation7 + $0x90] sm:$0xff]
    %v397 = vld [vmem:[#allocation7 + $0x98] sm:$0xff]
    %v398 = vld [vmem:[#allocation7 + $0xa0] sm:$0xff]
    %v399 = vld [vmem:[#allocation7 + $0xa8] sm:$0xff]
    %v400 = vld [vmem:[#allocation7 + $0xb0] sm:$0xff]
    %v401 = vld [vmem:[#allocation7 + $0xb8] sm:$0xff]
    %v402 = vld [vmem:[#allocation7 + $0xc0] sm:$0xff]
    %v403 = vld [vmem:[#allocation7 + $0xc8] sm:$0xff]
    %v404 = vld [vmem:[#allocation7 + $0xd0] sm:$0xff]
    %v405 = vld [vmem:[#allocation7 + $0xd8] sm:$0xff]
    %v406 = vld [vmem:[#allocation7 + $0xe0] sm:$0xff]
    %v407 = vld [vmem:[#allocation7 + $0xe8] sm:$0xff]
    %v408 = vld [vmem:[#allocation7 + $0xf0] sm:$0xff]
    %v409 = vld [vmem:[#allocation7 + $0xf8] sm:$0xff]
    %v410 = vld [vmem:[#allocation7 + $0x100] sm:$0xff]
    %v411 = vld [vmem:[#allocation7 + $0x108] sm:$0xff]
    %v412 = vld [vmem:[#allocation7 + $0x110] sm:$0xff]
    %v413 = vld [vmem:[#allocation7 + $0x118] sm:$0xff]
    %v414 = vld [vmem:[#allocation7 + $0x120] sm:$0xff]
    %v415 = vld [vmem:[#allocation7 + $0x128] sm:$0xff]
    %v416 = vld [vmem:[#allocation7 + $0x130] sm:$0xff]
    %v417 = vld [vmem:[#allocation7 + $0x138] sm:$0xff]
    %v418 = vld [vmem:[#allocation7 + $0x140] sm:$0xff]
    %v419 = vld [vmem:[#allocation7 + $0x148] sm:$0xff]
    %v420 = vld [vmem:[#allocation7 + $0x150] sm:$0xff]
    %v421 = vld [vmem:[#allocation7 + $0x158] sm:$0xff]
    %v422 = vld [vmem:[#allocation7 + $0x160] sm:$0xff]
    %v423 = vld [vmem:[#allocation7 + $0x168] sm:$0xff]
    %v424 = vld [vmem:[#allocation7 + $0x170] sm:$0xff]
    %v425 = vld [vmem:[#allocation7 + $0x178] sm:$0xff]
    %v426 = vld [vmem:[#allocation7 + $0x180] sm:$0xff]
    %v427 = vld [vmem:[#allocation7 + $0x188] sm:$0xff]
    %v428 = vld [vmem:[#allocation7 + $0x190] sm:$0xff]
    %v429 = vld [vmem:[#allocation7 + $0x198] sm:$0xff]
    %v430 = vld [vmem:[#allocation7 + $0x1a0] sm:$0xff]
    %v431 = vld [vmem:[#allocation7 + $0x1a8] sm:$0xff]
    %v432 = vld [vmem:[#allocation7 + $0x1b0] sm:$0xff]
    %v433 = vld [vmem:[#allocation7 + $0x1b8] sm:$0xff]
    %v434 = vld [vmem:[#allocation7 + $0x1c0] sm:$0xff]
    %v435 = vld [vmem:[#allocation7 + $0x1c8] sm:$0xff]
    %v436 = vld [vmem:[#allocation7 + $0x1d0] sm:$0xff]
    %v437 = vld [vmem:[#allocation7 + $0x1d8] sm:$0xff]
    %v438 = vld [vmem:[#allocation7 + $0x1e0] sm:$0xff]
    %v439 = vld [vmem:[#allocation7 + $0x1e8] sm:$0xff]
    %v440 = vld [vmem:[#allocation7 + $0x1f0] sm:$0xff]
    %v441 = vld [vmem:[#allocation7 + $0x1f8] sm:$0xff]
    %v442 = vld [vmem:[%s4] sm:$0x1]
    %v444 = vlaneseq
    %v445 = vshrl.u32 %v444, 7
    %v446 = vsub.s32 0, %v445
    %v447 = vrot.slane %v442, %v446
    %449 = vmatprep.subr.mxu0 0.0
    %450 = vmatpush1.msra.mxu0 %v378
    %451 = vmatprep.subr.mxu0 0.0
    %452 = vmatpush1.msra.mxu0 %v379
    %453 = vmatprep.subr.mxu0 0.0
    %454 = vmatpush1.msra.mxu0 %v380
    %455 = vmatprep.subr.mxu0 0.0
    %456 = vmatpush1.msra.mxu0 %v381
    %457 = vmatprep.subr.mxu0 0.0
    %458 = vmatpush1.msra.mxu0 %v382
    %459 = vmatprep.subr.mxu0 0.0
    %460 = vmatpush1.msra.mxu0 %v383
    %461 = vmatprep.subr.mxu0 0.0
    %462 = vmatpush1.msra.mxu0 %v384
    %463 = vmatprep.subr.mxu0 0.0
    %464 = vmatpush1.msra.mxu0 %v385
    %465 = vmatprep.subr.mxu0 0.0
    %466 = vmatpush1.msra.mxu0 %v386
    %467 = vmatprep.subr.mxu0 0.0
    %468 = vmatpush1.msra.mxu0 %v387
    %469 = vmatprep.subr.mxu0 0.0
    %470 = vmatpush1.msra.mxu0 %v388
    %471 = vmatprep.subr.mxu0 0.0
    %472 = vmatpush1.msra.mxu0 %v389
    %473 = vmatprep.subr.mxu0 0.0
    %474 = vmatpush1.msra.mxu0 %v390
    %475 = vmatprep.subr.mxu0 0.0
    %476 = vmatpush1.msra.mxu0 %v391
    %477 = vmatprep.subr.mxu0 0.0
    %478 = vmatpush1.msra.mxu0 %v392
    %479 = vmatprep.subr.mxu0 0.0
    %480 = vmatpush1.msra.mxu0 %v393
    %481 = vmatprep.subr.mxu0 0.0
    %482 = vmatpush1.msra.mxu0 %v394
    %483 = vmatprep.subr.mxu0 0.0
    %484 = vmatpush1.msra.mxu0 %v395
    %485 = vmatprep.subr.mxu0 0.0
    %486 = vmatpush1.msra.mxu0 %v396
    %487 = vmatprep.subr.mxu0 0.0
    %488 = vmatpush1.msra.mxu0 %v397
    %489 = vmatprep.subr.mxu0 0.0
    %490 = vmatpush1.msra.mxu0 %v398
    %491 = vmatprep.subr.mxu0 0.0
    %492 = vmatpush1.msra.mxu0 %v399
    %493 = vmatprep.subr.mxu0 0.0
    %494 = vmatpush1.msra.mxu0 %v400
    %495 = vmatprep.subr.mxu0 0.0
    %496 = vmatpush1.msra.mxu0 %v401
    %497 = vmatprep.subr.mxu0 0.0
    %498 = vmatpush1.msra.mxu0 %v402
    %499 = vmatprep.subr.mxu0 0.0
    %500 = vmatpush1.msra.mxu0 %v403
    %501 = vmatprep.subr.mxu0 0.0
    %502 = vmatpush1.msra.mxu0 %v404
    %503 = vmatprep.subr.mxu0 0.0
    %504 = vmatpush1.msra.mxu0 %v405
    %505 = vmatprep.subr.mxu0 0.0
    %506 = vmatpush1.msra.mxu0 %v406
    %507 = vmatprep.subr.mxu0 0.0
    %508 = vmatpush1.msra.mxu0 %v407
    %509 = vmatprep.subr.mxu0 0.0
    %510 = vmatpush1.msra.mxu0 %v408
    %511 = vmatprep.subr.mxu0 0.0
    %512 = vmatpush1.msra.mxu0 %v409
    %513 = vmatprep.mubr.f32.mxu0 %v371
    %514 = vmatmul.mubr.f32.gmra.mrb[0].mxu0 %v370
    %v515 = vpop.f32.mrb[0].mxu0
    %v516 = vadd.f32 %v447, %v515
    %v517 = vpop.f32.mrb[0].mxu0
    %518 = vmatprep.mubr.f32.mxu0 %v375
    %519 = vmatmul.mubr.f32.gmra.mrb[0].mxu0 %v374
    %v520 = vpop.f32.mrb[0].mxu0
    %v521 = vadd.f32 %v447, %v520
    %v522 = vpop.f32.mrb[0].mxu0
    %523 = vdwg.mxu0
    %524 = vmatprep.subr.mxu0 0.0
    %525 = vmatpush1.msra.mxu0 %v410
    %526 = vmatprep.subr.mxu0 0.0
    %527 = vmatpush1.msra.mxu0 %v411
    %528 = vmatprep.subr.mxu0 0.0
    %529 = vmatpush1.msra.mxu0 %v412
    %530 = vmatprep.subr.mxu0 0.0
    %531 = vmatpush1.msra.mxu0 %v413
    %532 = vmatprep.subr.mxu0 0.0
    %533 = vmatpush1.msra.mxu0 %v414
    %534 = vmatprep.subr.mxu0 0.0
    %535 = vmatpush1.msra.mxu0 %v415
    %536 = vmatprep.subr.mxu0 0.0
    %537 = vmatpush1.msra.mxu0 %v416
    %538 = vmatprep.subr.mxu0 0.0
    %539 = vmatpush1.msra.mxu0 %v417
    %540 = vmatprep.subr.mxu0 0.0
    %541 = vmatpush1.msra.mxu0 %v418
    %542 = vmatprep.subr.mxu0 0.0
    %543 = vmatpush1.msra.mxu0 %v419
    %544 = vmatprep.subr.mxu0 0.0
    %545 = vmatpush1.msra.mxu0 %v420
    %546 = vmatprep.subr.mxu0 0.0
    %547 = vmatpush1.msra.mxu0 %v421
    %548 = vmatprep.subr.mxu0 0.0
    %549 = vmatpush1.msra.mxu0 %v422
    %550 = vmatprep.subr.mxu0 0.0
    %551 = vmatpush1.msra.mxu0 %v423
    %552 = vmatprep.subr.mxu0 0.0
    %553 = vmatpush1.msra.mxu0 %v424
    %554 = vmatprep.subr.mxu0 0.0
    %555 = vmatpush1.msra.mxu0 %v425
    %556 = vmatprep.subr.mxu0 0.0
    %557 = vmatpush1.msra.mxu0 %v426
    %558 = vmatprep.subr.mxu0 0.0
    %559 = vmatpush1.msra.mxu0 %v427
    %560 = vmatprep.subr.mxu0 0.0
    %561 = vmatpush1.msra.mxu0 %v428
    %562 = vmatprep.subr.mxu0 0.0
    %563 = vmatpush1.msra.mxu0 %v429
    %564 = vmatprep.subr.mxu0 0.0
    %565 = vmatpush1.msra.mxu0 %v430
    %566 = vmatprep.subr.mxu0 0.0
    %567 = vmatpush1.msra.mxu0 %v431
    %568 = vmatprep.subr.mxu0 0.0
    %569 = vmatpush1.msra.mxu0 %v432
    %570 = vmatprep.subr.mxu0 0.0
    %571 = vmatpush1.msra.mxu0 %v433
    %572 = vmatprep.subr.mxu0 0.0
    %573 = vmatpush1.msra.mxu0 %v434
    %574 = vmatprep.subr.mxu0 0.0
    %575 = vmatpush1.msra.mxu0 %v435
    %576 = vmatprep.subr.mxu0 0.0
    %577 = vmatpush1.msra.mxu0 %v436
    %578 = vmatprep.subr.mxu0 0.0
    %579 = vmatpush1.msra.mxu0 %v437
    %580 = vmatprep.subr.mxu0 0.0
    %581 = vmatpush1.msra.mxu0 %v438
    %582 = vmatprep.subr.mxu0 0.0
    %583 = vmatpush1.msra.mxu0 %v439
    %584 = vmatprep.subr.mxu0 0.0
    %585 = vmatpush1.msra.mxu0 %v440
    %586 = vmatprep.subr.mxu0 0.0
    %587 = vmatpush1.msra.mxu0 %v441
    %588 = vmatprep.mubr.f32.mxu0 %v373
    %589 = vmatmul.mubr.f32.gmra.mrb[0].mxu0 %v372
    %v590 = vpop.f32.mrb[0].mxu0
    %v591 = vadd.f32 %v516, %v590
    %v592 = vpop.f32.mrb[0].mxu0
    %593 = vmatprep.mubr.f32.mxu0 %v377
    %594 = vmatmul.mubr.f32.gmra.mrb[0].mxu0 %v376
    %v595 = vpop.f32.mrb[0].mxu0
    %v596 = vadd.f32 %v521, %v595
    %v597 = vpop.f32.mrb[0].mxu0
    %598 = vdwg.mxu0
    %599 = vst [vmem:[#allocation8] sm:$0xff] %v591
    %600 = vst [vmem:[#allocation8 + $0x8] sm:$0xff] %v596
    // Predicated region
    $region34: #{tpu_custom_call.1} parent=1 // pred_check
      _
    $region35: #{tpu_custom_call.1} parent=1 // pred_check_branch
      %602 = sbr.rel (0) target = $region37
    $region36: #{tpu_custom_call.1} parent=1 // pred_region
      %s604 = ssub.s32 256, 256
      %605 = vsyncadd [#allocation4], %s604
      %s606 = sshll.u32 [#allocation8], 4
      %s607 = int_to_ptr.vmem [resolvable:$true] %s606
      %612 = dma.vmem_to_hbm [thread:$0]  %s607, 256, %s5, [#allocation4], 128, 128, 8
    $region37: #{tpu_custom_call.1} parent=1 // pred_fallthru
      _
    // Predicated region
    $region38: #{tpu_custom_call.1} parent=1 // pred_check
      _
    $region39: #{tpu_custom_call.1} parent=1 // pred_check_branch
      %614 = sbr.rel (0) target = $region41
    $region40: #{tpu_custom_call.1} parent=1 // pred_region
      %615 = dma.done [#allocation4], 256
    $region41: #{tpu_custom_call.1} parent=1 // pred_fallthru
      _
    %616 = vsyncpa [#allocation3], 1
    %617 = vsyncpa [#allocation6], 1
    %618 = vsyncpa [#allocation4], 1

</llo_original>
